<compile_context>
chip_gen: v7x
topology: tpu7x:2x2x1
jax: 0.10.0
libtpu: 0.0.40
codegen_flags: <defaults>
</compile_context>

<pallas_src>
import functools

import jax
import jax.numpy as jnp
from jax import lax
from jax.experimental import pallas as pl
from jax.experimental.pallas import tpu as pltpu


_TARGET_BLOCK_BYTES = 4 << 20     # per x block, per buffer
_VMEM_LIMIT_BYTES = 28 << 20      # < v7x 32 MiB scoped default / 64 MiB physical
_MIN_GRID_STEPS = 4               # >= 2 x TensorCores (v7x megacore)


# ---------------------------------------------------------------------------
# Block-size helpers
# ---------------------------------------------------------------------------
def _round_up(x, m):
    return ((x + m - 1) // m) * m


def _padded_block_bytes(nb, c, l, itemsize):
    """VMEM footprint of one (nb, C, L) tile including (8, 128) tile padding."""
    return nb * _round_up(c, 8) * _round_up(l, 128) * itemsize


def _largest_divisor_leq(n, cap):
    cap = max(1, min(n, cap))
    for d in range(cap, 0, -1):
        if n % d == 0:
            return d
    return 1


def _pick_block_b(batch, per_sample_bytes, l_steps):
    """Largest divisor of `batch` under the byte budget and grid-length floor."""
    cap_bytes = max(1, _TARGET_BLOCK_BYTES // max(1, per_sample_bytes))
    needed_b_steps = max(1, -(-_MIN_GRID_STEPS // max(1, l_steps)))  # ceil div
    cap_grid = max(1, batch // needed_b_steps) if batch >= needed_b_steps else batch
    return _largest_divisor_leq(batch, min(cap_bytes, cap_grid))


def _pick_block_l(length, c, itemsize):
    """Largest lane-aligned divisor of L that keeps a (1, C, block_l) tile in budget.

    Only multiple-of-128 divisors are considered so block shapes satisfy the
    (8, 128) tiling rule; otherwise fall back to the full length.
    """
    cands = [d for d in range(128, length, 128) if length % d == 0]
    fitting = [d for d in cands
               if _padded_block_bytes(1, c, d, itemsize) <= _TARGET_BLOCK_BYTES]
    if fitting:
        return max(fitting)
    if cands:
        return min(cands)
    # TODO(synk): ragged L (no 128-multiple divisor) would need masked partial
    # blocks; fall back to the full length instead.
    return length


# ---------------------------------------------------------------------------
# Kernels
# ---------------------------------------------------------------------------
def _se_fused_kernel(x_ref, w1_ref, w2_ref, o_ref):
    # x_ref / o_ref: (block_b, C, L) in the native PyTorch layout and dtype.
    # Squeeze: mean over L (cross-lane reduce), f32 accumulation fused into the
    # reduce (no full-size f32 copy of the tile).
    y = jnp.mean(x_ref[...], axis=-1, dtype=jnp.float32)              # (bb, C)

    # Excitation: Linear -> ReLU -> Linear -> Sigmoid, PyTorch weight layout
    # contracted directly (y @ w1.T, h @ w2.T).  Tiny MXU work; left as-is.
    h = lax.dot_general(y, w1_ref[...], (((1,), (1,)), ((), ())),
                        preferred_element_type=jnp.float32)            # (bb, C//r)
    h = jnp.maximum(h, 0.0)
    s = lax.dot_general(h, w2_ref[...], (((1,), (1,)), ((), ())),
                        preferred_element_type=jnp.float32)            # (bb, C)
    s = jax.nn.sigmoid(s)

    # Scale: re-read x from the VMEM ref (short live range) and multiply in the
    # native dtype; s broadcasts along the lane (L) axis.
    o_ref[...] = x_ref[...] * s.astype(o_ref.dtype)[:, :, None]


def _se_squeeze_kernel(inv_l, x_ref, w1_ref, w2_ref, s_ref):
    # Grid: (batch blocks, L blocks); L is the last, "arbitrary" reduction axis.
    # s_ref (block_b, C, 1) f32 doubles as the running-sum accumulator (it stays
    # resident in VMEM across the L sweep since its block index ignores l).
    l = pl.program_id(1)

    @pl.when(l == 0)
    def _init():
        s_ref[...] = jnp.zeros_like(s_ref)

    s_ref[...] += jnp.sum(x_ref[...], axis=-1, keepdims=True, dtype=jnp.float32)

    @pl.when(l == pl.num_programs(1) - 1)
    def _finalize():
        y = s_ref[...][:, :, 0] * inv_l                                # (bb, C)
        h = lax.dot_general(y, w1_ref[...], (((1,), (1,)), ((), ())),
                            preferred_element_type=jnp.float32)
        h = jnp.maximum(h, 0.0)
        s = lax.dot_general(h, w2_ref[...], (((1,), (1,)), ((), ())),
                            preferred_element_type=jnp.float32)
        s_ref[...] = jax.nn.sigmoid(s)[:, :, None]


def _se_scale_kernel(x_ref, s_ref, o_ref):
    # x_ref / o_ref: (block_b, C, block_l); s_ref: (block_b, C, 1) f32.
    o_ref[...] = x_ref[...] * s_ref[...].astype(o_ref.dtype)


# ---------------------------------------------------------------------------
# Wrapper
# ---------------------------------------------------------------------------
def se_block(x, w1, w2, *, block_b=None, force_two_pass=False):
    """SEBlock forward.  x: (B, C, L); w1: (C//r, C), w2: (C, C//r) (PyTorch layout)."""
    B, C, L = x.shape
    itemsize = jnp.dtype(x.dtype).itemsize
    per_sample_bytes = _padded_block_bytes(1, C, L, itemsize)

    fused_ok = (not force_two_pass) and per_sample_bytes <= _TARGET_BLOCK_BYTES

    if fused_ok:
        bb = block_b if block_b is not None else _pick_block_b(B, per_sample_bytes, 1)
        bb = _largest_divisor_leq(B, bb)
        grid = (B // bb,)
        return pl.pallas_call(
            _se_fused_kernel,
            out_shape=jax.ShapeDtypeStruct((B, C, L), x.dtype),
            grid=grid,
            in_specs=[
                pl.BlockSpec((bb, C, L), lambda b: (b, 0, 0)),
                pl.BlockSpec(w1.shape, lambda b: (0, 0)),
                pl.BlockSpec(w2.shape, lambda b: (0, 0)),
            ],
            out_specs=pl.BlockSpec((bb, C, L), lambda b: (b, 0, 0)),
            compiler_params=pltpu.CompilerParams(
                dimension_semantics=("parallel",),
                vmem_limit_bytes=_VMEM_LIMIT_BYTES),
        )(x, w1, w2)

    # ---- Two-pass path: L-tiled squeeze + excitation, then L-tiled scale. ----
    bl = _pick_block_l(L, C, itemsize)
    per_tile_bytes = _padded_block_bytes(1, C, bl, itemsize)
    bb = block_b if block_b is not None else _pick_block_b(B, per_tile_bytes, L // bl)
    bb = _largest_divisor_leq(B, bb)
    grid = (B // bb, L // bl)

    s = pl.pallas_call(
        functools.partial(_se_squeeze_kernel, 1.0 / float(L)),
        out_shape=jax.ShapeDtypeStruct((B, C, 1), jnp.float32),
        grid=grid,
        in_specs=[
            pl.BlockSpec((bb, C, bl), lambda b, l: (b, 0, l)),
            pl.BlockSpec(w1.shape, lambda b, l: (0, 0)),
            pl.BlockSpec(w2.shape, lambda b, l: (0, 0)),
        ],
        out_specs=pl.BlockSpec((bb, C, 1), lambda b, l: (b, 0, 0)),
        compiler_params=pltpu.CompilerParams(
            dimension_semantics=("parallel", "arbitrary"),
            vmem_limit_bytes=_VMEM_LIMIT_BYTES),
    )(x, w1, w2)

    return pl.pallas_call(
        _se_scale_kernel,
        out_shape=jax.ShapeDtypeStruct((B, C, L), x.dtype),
        grid=grid,
        in_specs=[
            pl.BlockSpec((bb, C, bl), lambda b, l: (b, 0, l)),
            pl.BlockSpec((bb, C, 1), lambda b, l: (b, 0, 0)),
        ],
        out_specs=pl.BlockSpec((bb, C, bl), lambda b, l: (b, 0, l)),
        compiler_params=pltpu.CompilerParams(
            dimension_semantics=("parallel", "parallel"),
            vmem_limit_bytes=_VMEM_LIMIT_BYTES),
    )(x, s)


def se_block_ref(x, w1, w2):
    """Pure-JAX reference matching PyTorch SEBlock.forward."""
    y = jnp.mean(x, axis=-1)                      # (B, C)
    h = jnp.maximum(y @ w1.T, 0.0)                # (B, C//r)
    s = jax.nn.sigmoid(h @ w2.T)                  # (B, C)
    return x * s[:, :, None]


if __name__ == "__main__":
    B, C, L = 8, 128, 16
    reduction = 16
    Cr = C // reduction

    key = jax.random.PRNGKey(0)
    kx, k1, k2 = jax.random.split(key, 3)

    x = jax.random.normal(kx, (B, C, L), dtype=jnp.float32)
    # Deterministic parameters in PyTorch Linear weight layout (bias=False).
    w1 = jax.random.normal(k1, (Cr, C), dtype=jnp.float32) * 0.1   # fc[0].weight
    w2 = jax.random.normal(k2, (C, Cr), dtype=jnp.float32) * 0.1   # fc[2].weight

    ref = se_block_ref(x, w1, w2)

    # Fused single-pass path (auto block sizing -> grid of 4 pipelined steps).
    out = jax.block_until_ready(se_block(x, w1, w2))
    assert out.shape == (B, C, L)
    assert jnp.allclose(out, ref, atol=1e-5, rtol=1e-5), "fused path mismatch"

    # Two-pass (L-tiled squeeze + scale) path, forced here so it is exercised.
    out2 = jax.block_until_ready(se_block(x, w1, w2, force_two_pass=True))
    assert jnp.allclose(out2, ref, atol=1e-5, rtol=1e-5), "two-pass path mismatch"

    print("KERNEL_OK")
</pallas_src>

<mosaic_0001>
module attributes {stable_mosaic.version = 11 : i64} {
  func.func @_se_fused_kernel(%arg0: i32, %arg1: memref<2x128x16xf32, #tpu.memory_space<vmem>>, %arg2: memref<8x128xf32, #tpu.memory_space<vmem>>, %arg3: memref<128x8xf32, #tpu.memory_space<vmem>>, %arg4: memref<2x128x16xf32, #tpu.memory_space<vmem>>) attributes {dimension_semantics = [#tpu.dimension_semantics<parallel>], iteration_bounds = array<i64: 4>, scalar_prefetch = 0 : i64, scratch_operands = 0 : i64, tpu.core_type = #tpu.core_type<tc>, window_params = [{transform_indices = @transform_0, window_bounds = array<i64: 2, 128, 16>}, {pipeline_mode = #tpu.pipeline_mode<synchronous>, transform_indices = @transform_1, window_bounds = array<i64: 8, 128>}, {pipeline_mode = #tpu.pipeline_mode<synchronous>, transform_indices = @transform_2, window_bounds = array<i64: 128, 8>}, {transform_indices = @transform_3, window_bounds = array<i64: 2, 128, 16>}]} {
    %c0 = arith.constant 0 : index
    %c0_0 = arith.constant 0 : index
    %c0_1 = arith.constant 0 : index
    %0 = vector.load %arg1[%c0, %c0_0, %c0_1] : memref<2x128x16xf32, #tpu.memory_space<vmem>>, vector<2x128x16xf32>
    %cst = arith.constant dense<0.000000e+00> : vector<2x128xf32>
    %1 = vector.multi_reduction <add>, %0, %cst [2] : vector<2x128x16xf32> to vector<2x128xf32>
    %cst_2 = arith.constant 1.600000e+01 : f32
    %2 = vector.broadcast %cst_2 : f32 to vector<2x128xf32>
    %3 = arith.divf %1, %2 : vector<2x128xf32>
    %c0_3 = arith.constant 0 : index
    %c0_4 = arith.constant 0 : index
    %4 = vector.load %arg2[%c0_3, %c0_4] : memref<8x128xf32, #tpu.memory_space<vmem>>, vector<8x128xf32>
    %cst_5 = arith.constant dense<0.000000e+00> : vector<2x8xf32>
    %5 = tpu.matmul %3, %4, %cst_5 {dimension_numbers = #tpu.dot_dimension_numbers<[1], [1], [0], [0], [0, 0, 1, 0], [], []>} : vector<2x128xf32>, vector<8x128xf32>, vector<2x8xf32> -> vector<2x8xf32>
    %cst_6 = arith.constant 0.000000e+00 : f32
    %6 = vector.broadcast %cst_6 : f32 to vector<2x8xf32>
    %7 = arith.maximumf %5, %6 : vector<2x8xf32>
    %c0_7 = arith.constant 0 : index
    %c0_8 = arith.constant 0 : index
    %8 = vector.load %arg3[%c0_7, %c0_8] : memref<128x8xf32, #tpu.memory_space<vmem>>, vector<128x8xf32>
    %cst_9 = arith.constant dense<0.000000e+00> : vector<2x128xf32>
    %9 = tpu.matmul %7, %8, %cst_9 {dimension_numbers = #tpu.dot_dimension_numbers<[1], [1], [0], [0], [0, 0, 1, 0], [], []>} : vector<2x8xf32>, vector<128x8xf32>, vector<2x128xf32> -> vector<2x128xf32>
    %10 = arith.negf %9 : vector<2x128xf32>
    %11 = math.exp %10 : vector<2x128xf32>
    %cst_10 = arith.constant 1.000000e+00 : f32
    %12 = vector.broadcast %cst_10 : f32 to vector<2x128xf32>
    %13 = arith.addf %12, %11 : vector<2x128xf32>
    %14 = arith.divf %12, %13 : vector<2x128xf32>
    %c0_11 = arith.constant 0 : index
    %c0_12 = arith.constant 0 : index
    %c0_13 = arith.constant 0 : index
    %15 = vector.load %arg1[%c0_11, %c0_12, %c0_13] : memref<2x128x16xf32, #tpu.memory_space<vmem>>, vector<2x128x16xf32>
    %16 = vector.shape_cast %14 : vector<2x128xf32> to vector<2x128x1xf32>
    %17 = vector.broadcast %16 : vector<2x128x1xf32> to vector<2x128x16xf32>
    %18 = arith.mulf %15, %17 : vector<2x128x16xf32>
    %c0_14 = arith.constant 0 : index
    %c0_15 = arith.constant 0 : index
    %c0_16 = arith.constant 0 : index
    %19 = vector.load %arg4[%c0_14, %c0_15, %c0_16] : memref<2x128x16xf32, #tpu.memory_space<vmem>>, vector<2x128x16xf32>
    tpu.vector_store %arg4[%c0_14, %c0_15, %c0_16], %18 {strides = array<i32>} : memref<2x128x16xf32, #tpu.memory_space<vmem>>, vector<2x128x16xf32>,
    return
  }
  func.func @transform_0(%arg0: i32) -> (i32, i32, i32) {
    %c0_i32 = arith.constant 0 : i32
    %c0_i32_0 = arith.constant 0 : i32
    %c0_i32_1 = arith.constant 0 : i32
    return %arg0, %c0_i32, %c0_i32_0 : i32, i32, i32
  }
  func.func @transform_1(%arg0: i32) -> (i32, i32) {
    %c0_i32 = arith.constant 0 : i32
    %c0_i32_0 = arith.constant 0 : i32
    %c0_i32_1 = arith.constant 0 : i32
    return %c0_i32, %c0_i32_0 : i32, i32
  }
  func.func @transform_2(%arg0: i32) -> (i32, i32) {
    %c0_i32 = arith.constant 0 : i32
    %c0_i32_0 = arith.constant 0 : i32
    %c0_i32_1 = arith.constant 0 : i32
    return %c0_i32, %c0_i32_0 : i32, i32
  }
  func.func @transform_3(%arg0: i32) -> (i32, i32, i32) {
    %c0_i32 = arith.constant 0 : i32
    %c0_i32_0 = arith.constant 0 : i32
    %c0_i32_1 = arith.constant 0 : i32
    return %arg0, %c0_i32, %c0_i32_0 : i32, i32, i32
  }
}

</mosaic_0001>

<llo_original>
// kernel: tpu_custom_call.1
$region0: #{tpu_custom_call.1}
  #allocation0 [shape = 'u32[]', space=smem, size = 0x4, offset = 0x4, fixed_abs, tag = 'smem constant byte address 0x4 - core index']
  #allocation1 [shape = 'u32[144,128]{1,0:T(1,128)}', space=vmem, size = 0x12000, scoped, tag = 'internal scratch']
  %s0 = inlined_call_operand.vmem [shape: f32[8,128,16], index: 0, kind: input, shape index: {}]
  %s1 = inlined_call_operand.vmem [shape: f32[8,128], index: 1, kind: input, shape index: {}]
  %s2 = inlined_call_operand.vmem [shape: f32[128,8], index: 2, kind: input, shape index: {}]
  %s3 = inlined_call_operand.vmem [shape: f32[8,128,16], index: 3, kind: output, shape index: {}]
  %s4 = sld [smem:[#allocation0]]
  $region45: #{tpu_custom_call.1} parent=0
    _
  %s6 = ssub.s32 1, %s4
  %s7 = scalar_select 0, %s6, %s4
  loop: start=0, step=1, limit=6
  $region2: #{tpu_custom_call.1} parent=0 // loop_pre_header
    _
  $region3: #{tpu_custom_call.1} parent=0 // loop_header
    %s9 = sphi 0, %s13
    %p10 = scmp.ge.s32.totalorder %s9, 6
    %s19 = sphi 0, %s21
    %s22 = sphi 0, %s19
    %s23 = sphi 0, %s22
    %s39 = sphi 0, %s23
    %s43 = sphi 0, %s43
    %s45 = sphi 0, %s43
    %s46 = sphi 0, %s45
    %s60 = sphi 0, %s46
    %s64 = sphi 0, %s64
    %s66 = sphi 0, %s64
    %s67 = sphi 0, %s66
    %s81 = sphi 0, %s67
    %s87 = sphi 0, %s89
    %s90 = sphi 0, %s87
    %s91 = sphi 0, %s90
    %s107 = sphi 0, %s91
  $region4: #{tpu_custom_call.1} parent=0 // loop_header_branch
    %12 = sbr.rel (%p10) target = $region8
  $region5: #{tpu_custom_call.1} parent=0 // loop_body
    %s14 = ssub.s32 %s9, 1
    %s15 = ssub.s32 %s9, 2
    %s16 = sadd.s32 %s9, 1
    %s17 = ssub.s32 %s9, %s16
    %p18 = scmp.eq.s32.totalorder %s17, 0
    %s20 = sadd.s32 %s19, 1
    %s21 = scalar_select %p18, %s19, %s20
    %p24 = pneg %p18
    %p25 = scmp.eq.s32.totalorder %s9, 3
    %p26 = por %p24, %p25
    %p27 = scmp.ne.s32.totalorder %s19, %s22
    %p28 = scmp.eq.s32.totalorder %s9, 0
    %p29 = por %p27, %p28
    %p30 = scmp.ne.s32.totalorder %s19, %s22
    %p31 = scmp.eq.s32.totalorder %s14, 3
    %p32 = por %p30, %p31
    %p33 = scmp.ne.s32.totalorder %s22, %s23
    %p34 = scmp.eq.s32.totalorder %s14, 0
    %p35 = por %p33, %p34
    %p36 = scmp.ne.s32.totalorder %s22, %s23
    %p37 = scmp.eq.s32.totalorder %s15, 3
    %p38 = por %p36, %p37
    %p40 = scmp.ne.s32.totalorder %s23, %s39
    %p41 = scmp.eq.s32.totalorder %s15, 0
    %p42 = por %p40, %p41
    %s44 = sadd.s32 %s43, 1
    %p47 = scmp.eq.s32.totalorder %s9, 3
    %p48 = scmp.ne.s32.totalorder %s43, %s45
    %p49 = scmp.eq.s32.totalorder %s9, 0
    %p50 = por %p48, %p49
    %p51 = scmp.ne.s32.totalorder %s43, %s45
    %p52 = scmp.eq.s32.totalorder %s14, 3
    %p53 = por %p51, %p52
    %p54 = scmp.ne.s32.totalorder %s45, %s46
    %p55 = scmp.eq.s32.totalorder %s14, 0
    %p56 = por %p54, %p55
    %p57 = scmp.ne.s32.totalorder %s45, %s46
    %p58 = scmp.eq.s32.totalorder %s15, 3
    %p59 = por %p57, %p58
    %p61 = scmp.ne.s32.totalorder %s46, %s60
    %p62 = scmp.eq.s32.totalorder %s15, 0
    %p63 = por %p61, %p62
    %s65 = sadd.s32 %s64, 1
    %p68 = scmp.eq.s32.totalorder %s9, 3
    %p69 = scmp.ne.s32.totalorder %s64, %s66
    %p70 = scmp.eq.s32.totalorder %s9, 0
    %p71 = por %p69, %p70
    %p72 = scmp.ne.s32.totalorder %s64, %s66
    %p73 = scmp.eq.s32.totalorder %s14, 3
    %p74 = por %p72, %p73
    %p75 = scmp.ne.s32.totalorder %s66, %s67
    %p76 = scmp.eq.s32.totalorder %s14, 0
    %p77 = por %p75, %p76
    %p78 = scmp.ne.s32.totalorder %s66, %s67
    %p79 = scmp.eq.s32.totalorder %s15, 3
    %p80 = por %p78, %p79
    %p82 = scmp.ne.s32.totalorder %s67, %s81
    %p83 = scmp.eq.s32.totalorder %s15, 0
    %p84 = por %p82, %p83
    %s85 = ssub.s32 %s9, %s16
    %p86 = scmp.eq.s32.totalorder %s85, 0
    %s88 = sadd.s32 %s87, 1
    %s89 = scalar_select %p86, %s87, %s88
    %p92 = pneg %p86
    %p93 = scmp.eq.s32.totalorder %s9, 3
    %p94 = por %p92, %p93
    %p95 = scmp.ne.s32.totalorder %s87, %s90
    %p96 = scmp.eq.s32.totalorder %s9, 0
    %p97 = por %p95, %p96
    %p98 = scmp.ne.s32.totalorder %s87, %s90
    %p99 = scmp.eq.s32.totalorder %s14, 3
    %p100 = por %p98, %p99
    %p101 = scmp.ne.s32.totalorder %s90, %s91
    %p102 = scmp.eq.s32.totalorder %s14, 0
    %p103 = por %p101, %p102
    %p104 = scmp.ne.s32.totalorder %s90, %s91
    %p105 = scmp.eq.s32.totalorder %s15, 3
    %p106 = por %p104, %p105
    %p108 = scmp.ne.s32.totalorder %s91, %s107
    %p109 = scmp.eq.s32.totalorder %s15, 0
    %p110 = por %p108, %p109
    %p111 = scmp.le.s32.totalorder 1, %s9
    %p112 = scmp.lt.s32.totalorder %s9, 5
    %p113 = pnand %p111, %p112
    %p114 = pneg %p113
    // Predicated region
    $region9: #{tpu_custom_call.1} parent=5 // pred_check
      _
    $region10: #{tpu_custom_call.1} parent=5 // pred_check_branch
      %116 = sbr.rel (%p113) target = $region12
    $region11: #{tpu_custom_call.1} parent=5 // pred_region
      %s117 = ssub.s32 %s9, 1
      // Predicated region
      $region13: #{tpu_custom_call.1} parent=11 // pred_check
        %p118 = pneg %p56
      $region14: #{tpu_custom_call.1} parent=11 // pred_check_branch
        %120 = sbr.rel (%p118) target = $region16
      $region15: #{tpu_custom_call.1} parent=11 // pred_region
        _
      $region16: #{tpu_custom_call.1} parent=11 // pred_fallthru
        _
      // Predicated region
      $region17: #{tpu_custom_call.1} parent=11 // pred_check
        %p121 = pneg %p77
      $region18: #{tpu_custom_call.1} parent=11 // pred_check_branch
        %123 = sbr.rel (%p121) target = $region20
      $region19: #{tpu_custom_call.1} parent=11 // pred_region
        _
      $region20: #{tpu_custom_call.1} parent=11 // pred_fallthru
        _
    $region12: #{tpu_custom_call.1} parent=5 // pred_fallthru
      _
    %p124 = scmp.lt.s32.totalorder %s9, 4
    // Predicated region
    $region21: #{tpu_custom_call.1} parent=5 // pred_check
      %p125 = pneg %p124
    $region22: #{tpu_custom_call.1} parent=5 // pred_check_branch
      %127 = sbr.rel (%p125) target = $region24
    $region23: #{tpu_custom_call.1} parent=5 // pred_region
      // Predicated region
      $region25: #{tpu_custom_call.1} parent=23 // pred_check
        %p128 = pneg %p29
      $region26: #{tpu_custom_call.1} parent=23 // pred_check_branch
        %130 = sbr.rel (%p128) target = $region28
      $region27: #{tpu_custom_call.1} parent=23 // pred_region
        %s131 = smul.u32 2, %s9
        %p132 = scmp.lt.s32.totalorder %s131, 7
        %s133 = scalar_select %p132, %s131, 7
        %s134 = smul.addr %s133, 16
        %s135 = smul.addr %s134, 8
        %s136 = scalar_lea.vmem %s0, %s135
        %s137 = smul.u32 2, %s9
      $region28: #{tpu_custom_call.1} parent=23 // pred_fallthru
        _
    $region24: #{tpu_custom_call.1} parent=5 // pred_fallthru
      _
    %p138 = scmp.le.s32.totalorder 1, %s9
    %p139 = scmp.lt.s32.totalorder %s9, 5
    %p140 = pnand %p138, %p139
    %p141 = pneg %p140
    // Predicated region
    $region29: #{tpu_custom_call.1} parent=5 // pred_check
      _
    $region30: #{tpu_custom_call.1} parent=5 // pred_check_branch
      %143 = sbr.rel (%p140) target = $region32
    $region31: #{tpu_custom_call.1} parent=5 // pred_region
      %s144 = ssub.s32 %s9, 1
      %s145 = smul.u32 2, %s14
      %p146 = scmp.lt.s32.totalorder %s145, 7
      %s147 = scalar_select %p146, %s145, 7
      %s148 = smul.addr %s147, 16
      %s149 = smul.addr %s148, 8
      %s150 = scalar_lea.vmem %s0, %s149
      %p151 = pneg %p35
      %p152 = pneg %p32
      %p153 = pneg %p56
      %p154 = pneg %p53
      %p155 = pneg %p77
      %p156 = pneg %p74
      %p157 = pneg %p103
      %p158 = pneg %p100
      %s159 = smul.u32 2, %s14
      %p160 = scmp.lt.s32.totalorder %s159, 7
      %s161 = scalar_select %p160, %s159, 7
      %s162 = smul.addr %s161, 16
      %s163 = smul.addr %s162, 8
      %s164 = scalar_lea.vmem %s3, %s163
      %s165 = smul.u32 2, %s14
      %p166 = scmp.lt.s32.totalorder %s165, 7
      %s167 = scalar_select %p166, %s165, 7
      %s168 = smul.addr %s167, 16
      %s169 = smul.addr %s168, 8
      %s170 = scalar_lea.vmem %s0, %s169
      %s171 = smul.u32 2, %s14
      %s172 = smul.u32 2, %s14
      %p173 = scmp.lt.s32.totalorder %s172, 7
      %s174 = scalar_select %p173, %s172, 7
      %s175 = smul.addr %s174, 16
      %s176 = smul.addr %s175, 8
      %s177 = scalar_lea.vmem %s3, %s176
      %s178 = smul.u32 2, %s14
      %v179 = vld [vmem:[%s170] sm:$0xff]
      %v180 = vld [vmem:[%s170 + $0x8] sm:$0xff]
      %v181 = vld [vmem:[%s170 + $0x10] sm:$0xff]
      %v182 = vld [vmem:[%s170 + $0x18] sm:$0xff]
      %v183 = vld [vmem:[%s170 + $0x20] sm:$0xff]
      %v184 = vld [vmem:[%s170 + $0x28] sm:$0xff]
      %v185 = vld [vmem:[%s170 + $0x30] sm:$0xff]
      %v186 = vld [vmem:[%s170 + $0x38] sm:$0xff]
      %v187 = vld [vmem:[%s170 + $0x40] sm:$0xff]
      %v188 = vld [vmem:[%s170 + $0x48] sm:$0xff]
      %v189 = vld [vmem:[%s170 + $0x50] sm:$0xff]
      %v190 = vld [vmem:[%s170 + $0x58] sm:$0xff]
      %v191 = vld [vmem:[%s170 + $0x60] sm:$0xff]
      %v192 = vld [vmem:[%s170 + $0x68] sm:$0xff]
      %v193 = vld [vmem:[%s170 + $0x70] sm:$0xff]
      %v194 = vld [vmem:[%s170 + $0x78] sm:$0xff]
      %v195 = vld [vmem:[%s170 + $0x80] sm:$0xff]
      %v196 = vld [vmem:[%s170 + $0x88] sm:$0xff]
      %v197 = vld [vmem:[%s170 + $0x90] sm:$0xff]
      %v198 = vld [vmem:[%s170 + $0x98] sm:$0xff]
      %v199 = vld [vmem:[%s170 + $0xa0] sm:$0xff]
      %v200 = vld [vmem:[%s170 + $0xa8] sm:$0xff]
      %v201 = vld [vmem:[%s170 + $0xb0] sm:$0xff]
      %v202 = vld [vmem:[%s170 + $0xb8] sm:$0xff]
      %v203 = vld [vmem:[%s170 + $0xc0] sm:$0xff]
      %v204 = vld [vmem:[%s170 + $0xc8] sm:$0xff]
      %v205 = vld [vmem:[%s170 + $0xd0] sm:$0xff]
      %v206 = vld [vmem:[%s170 + $0xd8] sm:$0xff]
      %v207 = vld [vmem:[%s170 + $0xe0] sm:$0xff]
      %v208 = vld [vmem:[%s170 + $0xe8] sm:$0xff]
      %v209 = vld [vmem:[%s170 + $0xf0] sm:$0xff]
      %v210 = vld [vmem:[%s170 + $0xf8] sm:$0xff]
      %vm211 = vcmask 130048
      %v212 = vsel %vm211, %v179, 0.0
      %213 = vadd.xlane.f32.xlu0 %v212
      %v214 = vpop.xlane.xlu0 %213
      %v215 = vsel %vm211, %v180, 0.0
      %216 = vadd.xlane.f32.xlu0 %v215
      %v217 = vpop.xlane.xlu0 %216
      %v218 = vsel %vm211, %v181, 0.0
      %219 = vadd.xlane.f32.xlu0 %v218
      %v220 = vpop.xlane.xlu0 %219
      %v221 = vsel %vm211, %v182, 0.0
      %222 = vadd.xlane.f32.xlu0 %v221
      %v223 = vpop.xlane.xlu0 %222
      %v224 = vsel %vm211, %v183, 0.0
      %225 = vadd.xlane.f32.xlu0 %v224
      %v226 = vpop.xlane.xlu0 %225
      %v227 = vsel %vm211, %v184, 0.0
      %228 = vadd.xlane.f32.xlu0 %v227
      %v229 = vpop.xlane.xlu0 %228
      %v230 = vsel %vm211, %v185, 0.0
      %231 = vadd.xlane.f32.xlu0 %v230
      %v232 = vpop.xlane.xlu0 %231
      %v233 = vsel %vm211, %v186, 0.0
      %234 = vadd.xlane.f32.xlu0 %v233
      %v235 = vpop.xlane.xlu0 %234
      %v236 = vsel %vm211, %v187, 0.0
      %237 = vadd.xlane.f32.xlu0 %v236
      %v238 = vpop.xlane.xlu0 %237
      %v239 = vsel %vm211, %v188, 0.0
      %240 = vadd.xlane.f32.xlu0 %v239
      %v241 = vpop.xlane.xlu0 %240
      %v242 = vsel %vm211, %v189, 0.0
      %243 = vadd.xlane.f32.xlu0 %v242
      %v244 = vpop.xlane.xlu0 %243
      %v245 = vsel %vm211, %v190, 0.0
      %246 = vadd.xlane.f32.xlu0 %v245
      %v247 = vpop.xlane.xlu0 %246
      %v248 = vsel %vm211, %v191, 0.0
      %249 = vadd.xlane.f32.xlu0 %v248
      %v250 = vpop.xlane.xlu0 %249
      %v251 = vsel %vm211, %v192, 0.0
      %252 = vadd.xlane.f32.xlu0 %v251
      %v253 = vpop.xlane.xlu0 %252
      %v254 = vsel %vm211, %v193, 0.0
      %255 = vadd.xlane.f32.xlu0 %v254
      %v256 = vpop.xlane.xlu0 %255
      %v257 = vsel %vm211, %v194, 0.0
      %258 = vadd.xlane.f32.xlu0 %v257
      %v259 = vpop.xlane.xlu0 %258
      %v260 = vsel %vm211, %v195, 0.0
      %261 = vadd.xlane.f32.xlu0 %v260
      %v262 = vpop.xlane.xlu0 %261
      %v263 = vsel %vm211, %v196, 0.0
      %264 = vadd.xlane.f32.xlu0 %v263
      %v265 = vpop.xlane.xlu0 %264
      %v266 = vsel %vm211, %v197, 0.0
      %267 = vadd.xlane.f32.xlu0 %v266
      %v268 = vpop.xlane.xlu0 %267
      %v269 = vsel %vm211, %v198, 0.0
      %270 = vadd.xlane.f32.xlu0 %v269
      %v271 = vpop.xlane.xlu0 %270
      %v272 = vsel %vm211, %v199, 0.0
      %273 = vadd.xlane.f32.xlu0 %v272
      %v274 = vpop.xlane.xlu0 %273
      %v275 = vsel %vm211, %v200, 0.0
      %276 = vadd.xlane.f32.xlu0 %v275
      %v277 = vpop.xlane.xlu0 %276
      %v278 = vsel %vm211, %v201, 0.0
      %279 = vadd.xlane.f32.xlu0 %v278
      %v280 = vpop.xlane.xlu0 %279
      %v281 = vsel %vm211, %v202, 0.0
      %282 = vadd.xlane.f32.xlu0 %v281
      %v283 = vpop.xlane.xlu0 %282
      %v284 = vsel %vm211, %v203, 0.0
      %285 = vadd.xlane.f32.xlu0 %v284
      %v286 = vpop.xlane.xlu0 %285
      %v287 = vsel %vm211, %v204, 0.0
      %288 = vadd.xlane.f32.xlu0 %v287
      %v289 = vpop.xlane.xlu0 %288
      %v290 = vsel %vm211, %v205, 0.0
      %291 = vadd.xlane.f32.xlu0 %v290
      %v292 = vpop.xlane.xlu0 %291
      %v293 = vsel %vm211, %v206, 0.0
      %294 = vadd.xlane.f32.xlu0 %v293
      %v295 = vpop.xlane.xlu0 %294
      %v296 = vsel %vm211, %v207, 0.0
      %297 = vadd.xlane.f32.xlu0 %v296
      %v298 = vpop.xlane.xlu0 %297
      %v299 = vsel %vm211, %v208, 0.0
      %300 = vadd.xlane.f32.xlu0 %v299
      %v301 = vpop.xlane.xlu0 %300
      %v302 = vsel %vm211, %v209, 0.0
      %303 = vadd.xlane.f32.xlu0 %v302
      %v304 = vpop.xlane.xlu0 %303
      %v305 = vsel %vm211, %v210, 0.0
      %306 = vadd.xlane.f32.xlu0 %v305
      %v307 = vpop.xlane.xlu0 %306
      %v308 = vrcp.pop 16.0
      %v309 = vmul.f32 %v214, %v308
      %v310 = vmul.f32 %v217, %v308
      %v311 = vmul.f32 %v220, %v308
      %v312 = vmul.f32 %v223, %v308
      %v313 = vmul.f32 %v226, %v308
      %v314 = vmul.f32 %v229, %v308
      %v315 = vmul.f32 %v232, %v308
      %v316 = vmul.f32 %v235, %v308
      %v317 = vmul.f32 %v238, %v308
      %v318 = vmul.f32 %v241, %v308
      %v319 = vmul.f32 %v244, %v308
      %v320 = vmul.f32 %v247, %v308
      %v321 = vmul.f32 %v250, %v308
      %v322 = vmul.f32 %v253, %v308
      %v323 = vmul.f32 %v256, %v308
      %v324 = vmul.f32 %v259, %v308
      %v325 = vmul.f32 %v262, %v308
      %v326 = vmul.f32 %v265, %v308
      %v327 = vmul.f32 %v268, %v308
      %v328 = vmul.f32 %v271, %v308
      %v329 = vmul.f32 %v274, %v308
      %v330 = vmul.f32 %v277, %v308
      %v331 = vmul.f32 %v280, %v308
      %v332 = vmul.f32 %v283, %v308
      %v333 = vmul.f32 %v286, %v308
      %v334 = vmul.f32 %v289, %v308
      %v335 = vmul.f32 %v292, %v308
      %v336 = vmul.f32 %v295, %v308
      %v337 = vmul.f32 %v298, %v308
      %v338 = vmul.f32 %v301, %v308
      %v339 = vmul.f32 %v304, %v308
      %v340 = vmul.f32 %v307, %v308
      %v341 = vld [vmem:[%s1] sm:$0xff]
      %v374 = vlaneseq
      %v375 = vand.u32 %v374, 127
      %v376 = vlaneseq
      %v377 = vshrl.u32 %v376, 7
      %v378 = vsub.s32 %v375, %v377
      %v379 = vrot.slane %v309, %v378
      %v380 = vadd.s32 %v375, 4294967288
      %v381 = vlaneseq
      %v382 = vshrl.u32 %v381, 7
      %v383 = vsub.s32 %v380, %v382
      %v384 = vrot.slane %v310, %v383
      %vm385 = vcmask 130112
      %v386 = vsel %vm385, %v384, %v379
      %v387 = vadd.s32 %v375, 4294967280
      %v388 = vlaneseq
      %v389 = vshrl.u32 %v388, 7
      %v390 = vsub.s32 %v387, %v389
      %v391 = vrot.slane %v311, %v390
      %vm392 = vcmask 195712
      %v393 = vsel %vm392, %v391, %v386
      %v394 = vadd.s32 %v375, 4294967272
      %v395 = vlaneseq
      %v396 = vshrl.u32 %v395, 7
      %v397 = vsub.s32 %v394, %v396
      %v398 = vrot.slane %v312, %v397
      %vm399 = vcmask 261312
      %v400 = vsel %vm399, %v398, %v393
      %v401 = vadd.s32 %v375, 4294967264
      %v402 = vlaneseq
      %v403 = vshrl.u32 %v402, 7
      %v404 = vsub.s32 %v401, %v403
      %v405 = vrot.slane %v313, %v404
      %vm406 = vcmask 326912
      %v407 = vsel %vm406, %v405, %v400
      %v408 = vadd.s32 %v375, 4294967256
      %v409 = vlaneseq
      %v410 = vshrl.u32 %v409, 7
      %v411 = vsub.s32 %v408, %v410
      %v412 = vrot.slane %v314, %v411
      %vm413 = vcmask 392512
      %v414 = vsel %vm413, %v412, %v407
      %v415 = vadd.s32 %v375, 4294967248
      %v416 = vlaneseq
      %v417 = vshrl.u32 %v416, 7
      %v418 = vsub.s32 %v415, %v417
      %v419 = vrot.slane %v315, %v418
      %vm420 = vcmask 458112
      %v421 = vsel %vm420, %v419, %v414
      %v422 = vadd.s32 %v375, 4294967240
      %v423 = vlaneseq
      %v424 = vshrl.u32 %v423, 7
      %v425 = vsub.s32 %v422, %v424
      %v426 = vrot.slane %v316, %v425
      %vm427 = vcmask 523712
      %v428 = vsel %vm427, %v426, %v421
      %v429 = vadd.s32 %v375, 4294967232
      %v430 = vlaneseq
      %v431 = vshrl.u32 %v430, 7
      %v432 = vsub.s32 %v429, %v431
      %v433 = vrot.slane %v317, %v432
      %vm434 = vcmask 589312
      %v435 = vsel %vm434, %v433, %v428
      %v436 = vadd.s32 %v375, 4294967224
      %v437 = vlaneseq
      %v438 = vshrl.u32 %v437, 7
      %v439 = vsub.s32 %v436, %v438
      %v440 = vrot.slane %v318, %v439
      %vm441 = vcmask 654912
      %v442 = vsel %vm441, %v440, %v435
      %v443 = vadd.s32 %v375, 4294967216
      %v444 = vlaneseq
      %v445 = vshrl.u32 %v444, 7
      %v446 = vsub.s32 %v443, %v445
      %v447 = vrot.slane %v319, %v446
      %vm448 = vcmask 720512
      %v449 = vsel %vm448, %v447, %v442
      %v450 = vadd.s32 %v375, 4294967208
      %v451 = vlaneseq
      %v452 = vshrl.u32 %v451, 7
      %v453 = vsub.s32 %v450, %v452
      %v454 = vrot.slane %v320, %v453
      %vm455 = vcmask 786112
      %v456 = vsel %vm455, %v454, %v449
      %v457 = vadd.s32 %v375, 4294967200
      %v458 = vlaneseq
      %v459 = vshrl.u32 %v458, 7
      %v460 = vsub.s32 %v457, %v459
      %v461 = vrot.slane %v321, %v460
      %vm462 = vcmask 851712
      %v463 = vsel %vm462, %v461, %v456
      %v464 = vadd.s32 %v375, 4294967192
      %v465 = vlaneseq
      %v466 = vshrl.u32 %v465, 7
      %v467 = vsub.s32 %v464, %v466
      %v468 = vrot.slane %v322, %v467
      %vm469 = vcmask 917312
      %v470 = vsel %vm469, %v468, %v463
      %v471 = vadd.s32 %v375, 4294967184
      %v472 = vlaneseq
      %v473 = vshrl.u32 %v472, 7
      %v474 = vsub.s32 %v471, %v473
      %v475 = vrot.slane %v323, %v474
      %vm476 = vcmask 982912
      %v477 = vsel %vm476, %v475, %v470
      %v478 = vadd.s32 %v375, 4294967176
      %v479 = vlaneseq
      %v480 = vshrl.u32 %v479, 7
      %v481 = vsub.s32 %v478, %v480
      %v482 = vrot.slane %v324, %v481
      %vm483 = vcmask 1048512
      %v484 = vsel %vm483, %v482, %v477
      %v485 = vlaneseq
      %v486 = vshrl.u32 %v485, 7
      %v487 = vsub.s32 %v375, %v486
      %v488 = vrot.slane %v325, %v487
      %v489 = vlaneseq
      %v490 = vshrl.u32 %v489, 7
      %v491 = vsub.s32 %v380, %v490
      %v492 = vrot.slane %v326, %v491
      %v493 = vsel %vm385, %v492, %v488
      %v494 = vlaneseq
      %v495 = vshrl.u32 %v494, 7
      %v496 = vsub.s32 %v387, %v495
      %v497 = vrot.slane %v327, %v496
      %v498 = vsel %vm392, %v497, %v493
      %v499 = vlaneseq
      %v500 = vshrl.u32 %v499, 7
      %v501 = vsub.s32 %v394, %v500
      %v502 = vrot.slane %v328, %v501
      %v503 = vsel %vm399, %v502, %v498
      %v504 = vlaneseq
      %v505 = vshrl.u32 %v504, 7
      %v506 = vsub.s32 %v401, %v505
      %v507 = vrot.slane %v329, %v506
      %v508 = vsel %vm406, %v507, %v503
      %v509 = vlaneseq
      %v510 = vshrl.u32 %v509, 7
      %v511 = vsub.s32 %v408, %v510
      %v512 = vrot.slane %v330, %v511
      %v513 = vsel %vm413, %v512, %v508
      %v514 = vlaneseq
      %v515 = vshrl.u32 %v514, 7
      %v516 = vsub.s32 %v415, %v515
      %v517 = vrot.slane %v331, %v516
      %v518 = vsel %vm420, %v517, %v513
      %v519 = vlaneseq
      %v520 = vshrl.u32 %v519, 7
      %v521 = vsub.s32 %v422, %v520
      %v522 = vrot.slane %v332, %v521
      %v523 = vsel %vm427, %v522, %v518
      %v524 = vlaneseq
      %v525 = vshrl.u32 %v524, 7
      %v526 = vsub.s32 %v429, %v525
      %v527 = vrot.slane %v333, %v526
      %v528 = vsel %vm434, %v527, %v523
      %v529 = vlaneseq
      %v530 = vshrl.u32 %v529, 7
      %v531 = vsub.s32 %v436, %v530
      %v532 = vrot.slane %v334, %v531
      %v533 = vsel %vm441, %v532, %v528
      %v534 = vlaneseq
      %v535 = vshrl.u32 %v534, 7
      %v536 = vsub.s32 %v443, %v535
      %v537 = vrot.slane %v335, %v536
      %v538 = vsel %vm448, %v537, %v533
      %v539 = vlaneseq
      %v540 = vshrl.u32 %v539, 7
      %v541 = vsub.s32 %v450, %v540
      %v542 = vrot.slane %v336, %v541
      %v543 = vsel %vm455, %v542, %v538
      %v544 = vlaneseq
      %v545 = vshrl.u32 %v544, 7
      %v546 = vsub.s32 %v457, %v545
      %v547 = vrot.slane %v337, %v546
      %v548 = vsel %vm462, %v547, %v543
      %v549 = vlaneseq
      %v550 = vshrl.u32 %v549, 7
      %v551 = vsub.s32 %v464, %v550
      %v552 = vrot.slane %v338, %v551
      %v553 = vsel %vm469, %v552, %v548
      %v554 = vlaneseq
      %v555 = vshrl.u32 %v554, 7
      %v556 = vsub.s32 %v471, %v555
      %v557 = vrot.slane %v339, %v556
      %v558 = vsel %vm476, %v557, %v553
      %v559 = vlaneseq
      %v560 = vshrl.u32 %v559, 7
      %v561 = vsub.s32 %v478, %v560
      %v562 = vrot.slane %v340, %v561
      %v563 = vsel %vm483, %v562, %v558
      %vm564 = vcmask 1041409
      %v565 = vsel %vm564, %v563, %v484
      %567 = vmatprep.subr.mxu0 0.0
      %568 = vmatpush1.xpose.msra.mxu0 %v341
      %569 = vmatprep.subr.mxu0 0.0
      %570 = vmatpush1.xpose.msra.mxu0 0.0
      %571 = vmatprep.subr.mxu0 0.0
      %572 = vmatpush1.xpose.msra.mxu0 0.0
      %573 = vmatprep.subr.mxu0 0.0
      %574 = vmatpush1.xpose.msra.mxu0 0.0
      %575 = vmatprep.subr.mxu0 0.0
      %576 = vmatpush1.xpose.msra.mxu0 0.0
      %577 = vmatprep.subr.mxu0 0.0
      %578 = vmatpush1.xpose.msra.mxu0 0.0
      %579 = vmatprep.subr.mxu0 0.0
      %580 = vmatpush1.xpose.msra.mxu0 0.0
      %581 = vmatprep.subr.mxu0 0.0
      %582 = vmatpush1.xpose.msra.mxu0 0.0
      %583 = vmatprep.subr.mxu0 0.0
      %584 = vmatpush1.xpose.msra.mxu0 0.0
      %585 = vmatprep.subr.mxu0 0.0
      %586 = vmatpush1.xpose.msra.mxu0 0.0
      %587 = vmatprep.subr.mxu0 0.0
      %588 = vmatpush1.xpose.msra.mxu0 0.0
      %589 = vmatprep.subr.mxu0 0.0
      %590 = vmatpush1.xpose.msra.mxu0 0.0
      %591 = vmatprep.subr.mxu0 0.0
      %592 = vmatpush1.xpose.msra.mxu0 0.0
      %593 = vmatprep.subr.mxu0 0.0
      %594 = vmatpush1.xpose.msra.mxu0 0.0
      %595 = vmatprep.subr.mxu0 0.0
      %596 = vmatpush1.xpose.msra.mxu0 0.0
      %597 = vmatprep.subr.mxu0 0.0
      %598 = vmatpush1.xpose.msra.mxu0 0.0
      %599 = vmatprep.subr.mxu0 0.0
      %600 = vmatpush1.xpose.msra.mxu0 0.0
      %601 = vmatprep.subr.mxu0 0.0
      %602 = vmatpush1.xpose.msra.mxu0 0.0
      %603 = vmatprep.subr.mxu0 0.0
      %604 = vmatpush1.xpose.msra.mxu0 0.0
      %605 = vmatprep.subr.mxu0 0.0
      %606 = vmatpush1.xpose.msra.mxu0 0.0
      %607 = vmatprep.subr.mxu0 0.0
      %608 = vmatpush1.xpose.msra.mxu0 0.0
      %609 = vmatprep.subr.mxu0 0.0
      %610 = vmatpush1.xpose.msra.mxu0 0.0
      %611 = vmatprep.subr.mxu0 0.0
      %612 = vmatpush1.xpose.msra.mxu0 0.0
      %613 = vmatprep.subr.mxu0 0.0
      %614 = vmatpush1.xpose.msra.mxu0 0.0
      %615 = vmatprep.subr.mxu0 0.0
      %616 = vmatpush1.xpose.msra.mxu0 0.0
      %617 = vmatprep.subr.mxu0 0.0
      %618 = vmatpush1.xpose.msra.mxu0 0.0
      %619 = vmatprep.subr.mxu0 0.0
      %620 = vmatpush1.xpose.msra.mxu0 0.0
      %621 = vmatprep.subr.mxu0 0.0
      %622 = vmatpush1.xpose.msra.mxu0 0.0
      %623 = vmatprep.subr.mxu0 0.0
      %624 = vmatpush1.xpose.msra.mxu0 0.0
      %625 = vmatprep.subr.mxu0 0.0
      %626 = vmatpush1.xpose.msra.mxu0 0.0
      %627 = vmatprep.subr.mxu0 0.0
      %628 = vmatpush1.xpose.msra.mxu0 0.0
      %629 = vmatprep.subr.mxu0 0.0
      %630 = vmatpush1.xpose.msra.mxu0 0.0
      %631 = vmatprep.mubr.f32.mxu0 0.0
      %632 = vmatmul.mubr.f32.gmra.mrb[0].mxu0 %v565
      %v633 = vpop.f32.mrb[0].mxu0
      %v634 = vadd.f32 0.0, %v633
      %v635 = vpop.f32.mrb[0].mxu0
      %636 = vdwg.mxu0
      %v637 = vmax.f32 %v634, 0.0
      %v638 = vld [vmem:[%s2] sm:$0xff]
      %v639 = vld [vmem:[%s2 + $0x8] sm:$0xff]
      %v640 = vld [vmem:[%s2 + $0x10] sm:$0xff]
      %v641 = vld [vmem:[%s2 + $0x18] sm:$0xff]
      %v642 = vld [vmem:[%s2 + $0x20] sm:$0xff]
      %v643 = vld [vmem:[%s2 + $0x28] sm:$0xff]
      %v644 = vld [vmem:[%s2 + $0x30] sm:$0xff]
      %v645 = vld [vmem:[%s2 + $0x38] sm:$0xff]
      %v646 = vld [vmem:[%s2 + $0x40] sm:$0xff]
      %v647 = vld [vmem:[%s2 + $0x48] sm:$0xff]
      %v648 = vld [vmem:[%s2 + $0x50] sm:$0xff]
      %v649 = vld [vmem:[%s2 + $0x58] sm:$0xff]
      %v650 = vld [vmem:[%s2 + $0x60] sm:$0xff]
      %v651 = vld [vmem:[%s2 + $0x68] sm:$0xff]
      %v652 = vld [vmem:[%s2 + $0x70] sm:$0xff]
      %v653 = vld [vmem:[%s2 + $0x78] sm:$0xff]
      %vm654 = vcmask 64512
      %v656 = vsel %vm654, %v637, 0
      %v659 = vsel %vm654, %v638, 0
      %v662 = vsel %vm654, %v639, 0
      %v665 = vsel %vm654, %v640, 0
      %v668 = vsel %vm654, %v641, 0
      %v671 = vsel %vm654, %v642, 0
      %v674 = vsel %vm654, %v643, 0
      %v677 = vsel %vm654, %v644, 0
      %v680 = vsel %vm654, %v645, 0
      %v683 = vsel %vm654, %v646, 0
      %v686 = vsel %vm654, %v647, 0
      %v689 = vsel %vm654, %v648, 0
      %v692 = vsel %vm654, %v649, 0
      %v695 = vsel %vm654, %v650, 0
      %v698 = vsel %vm654, %v651, 0
      %v701 = vsel %vm654, %v652, 0
      %v704 = vsel %vm654, %v653, 0
      %706 = vmatprep.subr.mxu0 0.0
      %707 = vmatpush1.xpose.msra.mxu0 %v659
      %708 = vmatprep.subr.mxu0 0.0
      %709 = vmatpush1.xpose.msra.mxu0 %v662
      %710 = vmatprep.subr.mxu0 0.0
      %711 = vmatpush1.xpose.msra.mxu0 %v665
      %712 = vmatprep.subr.mxu0 0.0
      %713 = vmatpush1.xpose.msra.mxu0 %v668
      %714 = vmatprep.subr.mxu0 0.0
      %715 = vmatpush1.xpose.msra.mxu0 %v671
      %716 = vmatprep.subr.mxu0 0.0
      %717 = vmatpush1.xpose.msra.mxu0 %v674
      %718 = vmatprep.subr.mxu0 0.0
      %719 = vmatpush1.xpose.msra.mxu0 %v677
      %720 = vmatprep.subr.mxu0 0.0
      %721 = vmatpush1.xpose.msra.mxu0 %v680
      %722 = vmatprep.subr.mxu0 0.0
      %723 = vmatpush1.xpose.msra.mxu0 %v683
      %724 = vmatprep.subr.mxu0 0.0
      %725 = vmatpush1.xpose.msra.mxu0 %v686
      %726 = vmatprep.subr.mxu0 0.0
      %727 = vmatpush1.xpose.msra.mxu0 %v689
      %728 = vmatprep.subr.mxu0 0.0
      %729 = vmatpush1.xpose.msra.mxu0 %v692
      %730 = vmatprep.subr.mxu0 0.0
      %731 = vmatpush1.xpose.msra.mxu0 %v695
      %732 = vmatprep.subr.mxu0 0.0
      %733 = vmatpush1.xpose.msra.mxu0 %v698
      %734 = vmatprep.subr.mxu0 0.0
      %735 = vmatpush1.xpose.msra.mxu0 %v701
      %736 = vmatprep.subr.mxu0 0.0
      %737 = vmatpush1.xpose.msra.mxu0 %v704
      %738 = vmatprep.subr.mxu0 0.0
      %739 = vmatpush1.xpose.msra.mxu0 0.0
      %740 = vmatprep.subr.mxu0 0.0
      %741 = vmatpush1.xpose.msra.mxu0 0.0
      %742 = vmatprep.subr.mxu0 0.0
      %743 = vmatpush1.xpose.msra.mxu0 0.0
      %744 = vmatprep.subr.mxu0 0.0
      %745 = vmatpush1.xpose.msra.mxu0 0.0
      %746 = vmatprep.subr.mxu0 0.0
      %747 = vmatpush1.xpose.msra.mxu0 0.0
      %748 = vmatprep.subr.mxu0 0.0
      %749 = vmatpush1.xpose.msra.mxu0 0.0
      %750 = vmatprep.subr.mxu0 0.0
      %751 = vmatpush1.xpose.msra.mxu0 0.0
      %752 = vmatprep.subr.mxu0 0.0
      %753 = vmatpush1.xpose.msra.mxu0 0.0
      %754 = vmatprep.subr.mxu0 0.0
      %755 = vmatpush1.xpose.msra.mxu0 0.0
      %756 = vmatprep.subr.mxu0 0.0
      %757 = vmatpush1.xpose.msra.mxu0 0.0
      %758 = vmatprep.subr.mxu0 0.0
      %759 = vmatpush1.xpose.msra.mxu0 0.0
      %760 = vmatprep.subr.mxu0 0.0
      %761 = vmatpush1.xpose.msra.mxu0 0.0
      %762 = vmatprep.subr.mxu0 0.0
      %763 = vmatpush1.xpose.msra.mxu0 0.0
      %764 = vmatprep.subr.mxu0 0.0
      %765 = vmatpush1.xpose.msra.mxu0 0.0
      %766 = vmatprep.subr.mxu0 0.0
      %767 = vmatpush1.xpose.msra.mxu0 0.0
      %768 = vmatprep.subr.mxu0 0.0
      %769 = vmatpush1.xpose.msra.mxu0 0.0
      %770 = vmatprep.mubr.f32.mxu0 0.0
      %771 = vmatmul.mubr.f32.gmra.mrb[0].mxu0 %v656
      %v772 = vpop.f32.mrb[0].mxu0
      %v773 = vadd.f32 0.0, %v772
      %v774 = vpop.f32.mrb[0].mxu0
      %775 = vdwg.mxu0
      %v776 = vxor.u32 %v773, 2147483648
      %v777 = vmul.f32 %v776, 1.442695
      %v778 = vpow.pop %v777
      %v779 = vadd.f32 %v778, 1.0
      %v780 = vrcp.pop %v779
      %v781 = vmul.f32 1.0, %v780
      %v782 = vlaneseq
      %v783 = vshrl.u32 %v782, 7
      %v784 = vsub.s32 0, %v783
      %v785 = vrot.slane %v781, %v784
      %787 = vbcast.lane.b32.xlu0 %v785, 256
      %v788 = vpop.permute.xlu0 %787
      %s790 = sor.u32 256, 8
      %791 = vbcast.lane.b32.xlu0 %v785, %s790
      %v792 = vpop.permute.xlu0 %791
      %s794 = sor.u32 256, 16
      %795 = vbcast.lane.b32.xlu0 %v785, %s794
      %v796 = vpop.permute.xlu0 %795
      %s798 = sor.u32 256, 24
      %799 = vbcast.lane.b32.xlu0 %v785, %s798
      %v800 = vpop.permute.xlu0 %799
      %s802 = sor.u32 256, 32
      %803 = vbcast.lane.b32.xlu0 %v785, %s802
      %v804 = vpop.permute.xlu0 %803
      %s806 = sor.u32 256, 40
      %807 = vbcast.lane.b32.xlu0 %v785, %s806
      %v808 = vpop.permute.xlu0 %807
      %s810 = sor.u32 256, 48
      %811 = vbcast.lane.b32.xlu0 %v785, %s810
      %v812 = vpop.permute.xlu0 %811
      %s814 = sor.u32 256, 56
      %815 = vbcast.lane.b32.xlu0 %v785, %s814
      %v816 = vpop.permute.xlu0 %815
      %s818 = sor.u32 256, 64
      %819 = vbcast.lane.b32.xlu0 %v785, %s818
      %v820 = vpop.permute.xlu0 %819
      %s822 = sor.u32 256, 72
      %823 = vbcast.lane.b32.xlu0 %v785, %s822
      %v824 = vpop.permute.xlu0 %823
      %s826 = sor.u32 256, 80
      %827 = vbcast.lane.b32.xlu0 %v785, %s826
      %v828 = vpop.permute.xlu0 %827
      %s830 = sor.u32 256, 88
      %831 = vbcast.lane.b32.xlu0 %v785, %s830
      %v832 = vpop.permute.xlu0 %831
      %s834 = sor.u32 256, 96
      %835 = vbcast.lane.b32.xlu0 %v785, %s834
      %v836 = vpop.permute.xlu0 %835
      %s838 = sor.u32 256, 104
      %839 = vbcast.lane.b32.xlu0 %v785, %s838
      %v840 = vpop.permute.xlu0 %839
      %s842 = sor.u32 256, 112
      %843 = vbcast.lane.b32.xlu0 %v785, %s842
      %v844 = vpop.permute.xlu0 %843
      %s846 = sor.u32 256, 120
      %847 = vbcast.lane.b32.xlu0 %v785, %s846
      %v848 = vpop.permute.xlu0 %847
      %v849 = vlaneseq
      %v850 = vshrl.u32 %v849, 7
      %v851 = vsub.s32 1, %v850
      %v852 = vrot.slane %v781, %v851
      %854 = vbcast.lane.b32.xlu0 %v852, 256
      %v855 = vpop.permute.xlu0 %854
      %s857 = sor.u32 256, 8
      %858 = vbcast.lane.b32.xlu0 %v852, %s857
      %v859 = vpop.permute.xlu0 %858
      %s861 = sor.u32 256, 16
      %862 = vbcast.lane.b32.xlu0 %v852, %s861
      %v863 = vpop.permute.xlu0 %862
      %s865 = sor.u32 256, 24
      %866 = vbcast.lane.b32.xlu0 %v852, %s865
      %v867 = vpop.permute.xlu0 %866
      %s869 = sor.u32 256, 32
      %870 = vbcast.lane.b32.xlu0 %v852, %s869
      %v871 = vpop.permute.xlu0 %870
      %s873 = sor.u32 256, 40
      %874 = vbcast.lane.b32.xlu0 %v852, %s873
      %v875 = vpop.permute.xlu0 %874
      %s877 = sor.u32 256, 48
      %878 = vbcast.lane.b32.xlu0 %v852, %s877
      %v879 = vpop.permute.xlu0 %878
      %s881 = sor.u32 256, 56
      %882 = vbcast.lane.b32.xlu0 %v852, %s881
      %v883 = vpop.permute.xlu0 %882
      %s885 = sor.u32 256, 64
      %886 = vbcast.lane.b32.xlu0 %v852, %s885
      %v887 = vpop.permute.xlu0 %886
      %s889 = sor.u32 256, 72
      %890 = vbcast.lane.b32.xlu0 %v852, %s889
      %v891 = vpop.permute.xlu0 %890
      %s893 = sor.u32 256, 80
      %894 = vbcast.lane.b32.xlu0 %v852, %s893
      %v895 = vpop.permute.xlu0 %894
      %s897 = sor.u32 256, 88
      %898 = vbcast.lane.b32.xlu0 %v852, %s897
      %v899 = vpop.permute.xlu0 %898
      %s901 = sor.u32 256, 96
      %902 = vbcast.lane.b32.xlu0 %v852, %s901
      %v903 = vpop.permute.xlu0 %902
      %s905 = sor.u32 256, 104
      %906 = vbcast.lane.b32.xlu0 %v852, %s905
      %v907 = vpop.permute.xlu0 %906
      %s909 = sor.u32 256, 112
      %910 = vbcast.lane.b32.xlu0 %v852, %s909
      %v911 = vpop.permute.xlu0 %910
      %s913 = sor.u32 256, 120
      %914 = vbcast.lane.b32.xlu0 %v852, %s913
      %v915 = vpop.permute.xlu0 %914
      %v916 = vmul.f32 %v179, %v788
      %v917 = vmul.f32 %v180, %v792
      %v918 = vmul.f32 %v181, %v796
      %v919 = vmul.f32 %v182, %v800
      %v920 = vmul.f32 %v183, %v804
      %v921 = vmul.f32 %v184, %v808
      %v922 = vmul.f32 %v185, %v812
      %v923 = vmul.f32 %v186, %v816
      %v924 = vmul.f32 %v187, %v820
      %v925 = vmul.f32 %v188, %v824
      %v926 = vmul.f32 %v189, %v828
      %v927 = vmul.f32 %v190, %v832
      %v928 = vmul.f32 %v191, %v836
      %v929 = vmul.f32 %v192, %v840
      %v930 = vmul.f32 %v193, %v844
      %v931 = vmul.f32 %v194, %v848
      %v932 = vmul.f32 %v195, %v855
      %v933 = vmul.f32 %v196, %v859
      %v934 = vmul.f32 %v197, %v863
      %v935 = vmul.f32 %v198, %v867
      %v936 = vmul.f32 %v199, %v871
      %v937 = vmul.f32 %v200, %v875
      %v938 = vmul.f32 %v201, %v879
      %v939 = vmul.f32 %v202, %v883
      %v940 = vmul.f32 %v203, %v887
      %v941 = vmul.f32 %v204, %v891
      %v942 = vmul.f32 %v205, %v895
      %v943 = vmul.f32 %v206, %v899
      %v944 = vmul.f32 %v207, %v903
      %v945 = vmul.f32 %v208, %v907
      %v946 = vmul.f32 %v209, %v911
      %v947 = vmul.f32 %v210, %v915
      %948 = vst.msk [vmem:[%s177] sm:$0xff] %vm211, %v916
      %949 = vst.msk [vmem:[%s177 + $0x8] sm:$0xff] %vm211, %v917
      %950 = vst.msk [vmem:[%s177 + $0x10] sm:$0xff] %vm211, %v918
      %951 = vst.msk [vmem:[%s177 + $0x18] sm:$0xff] %vm211, %v919
      %952 = vst.msk [vmem:[%s177 + $0x20] sm:$0xff] %vm211, %v920
      %953 = vst.msk [vmem:[%s177 + $0x28] sm:$0xff] %vm211, %v921
      %954 = vst.msk [vmem:[%s177 + $0x30] sm:$0xff] %vm211, %v922
      %955 = vst.msk [vmem:[%s177 + $0x38] sm:$0xff] %vm211, %v923
      %956 = vst.msk [vmem:[%s177 + $0x40] sm:$0xff] %vm211, %v924
      %957 = vst.msk [vmem:[%s177 + $0x48] sm:$0xff] %vm211, %v925
      %958 = vst.msk [vmem:[%s177 + $0x50] sm:$0xff] %vm211, %v926
      %959 = vst.msk [vmem:[%s177 + $0x58] sm:$0xff] %vm211, %v927
      %960 = vst.msk [vmem:[%s177 + $0x60] sm:$0xff] %vm211, %v928
      %961 = vst.msk [vmem:[%s177 + $0x68] sm:$0xff] %vm211, %v929
      %962 = vst.msk [vmem:[%s177 + $0x70] sm:$0xff] %vm211, %v930
      %963 = vst.msk [vmem:[%s177 + $0x78] sm:$0xff] %vm211, %v931
      %964 = vst.msk [vmem:[%s177 + $0x80] sm:$0xff] %vm211, %v932
      %965 = vst.msk [vmem:[%s177 + $0x88] sm:$0xff] %vm211, %v933
      %966 = vst.msk [vmem:[%s177 + $0x90] sm:$0xff] %vm211, %v934
      %967 = vst.msk [vmem:[%s177 + $0x98] sm:$0xff] %vm211, %v935
      %968 = vst.msk [vmem:[%s177 + $0xa0] sm:$0xff] %vm211, %v936
      %969 = vst.msk [vmem:[%s177 + $0xa8] sm:$0xff] %vm211, %v937
      %970 = vst.msk [vmem:[%s177 + $0xb0] sm:$0xff] %vm211, %v938
      %971 = vst.msk [vmem:[%s177 + $0xb8] sm:$0xff] %vm211, %v939
      %972 = vst.msk [vmem:[%s177 + $0xc0] sm:$0xff] %vm211, %v940
      %973 = vst.msk [vmem:[%s177 + $0xc8] sm:$0xff] %vm211, %v941
      %974 = vst.msk [vmem:[%s177 + $0xd0] sm:$0xff] %vm211, %v942
      %975 = vst.msk [vmem:[%s177 + $0xd8] sm:$0xff] %vm211, %v943
      %976 = vst.msk [vmem:[%s177 + $0xe0] sm:$0xff] %vm211, %v944
      %977 = vst.msk [vmem:[%s177 + $0xe8] sm:$0xff] %vm211, %v945
      %978 = vst.msk [vmem:[%s177 + $0xf0] sm:$0xff] %vm211, %v946
      %979 = vst.msk [vmem:[%s177 + $0xf8] sm:$0xff] %vm211, %v947
      %s980 = smul.u32 2, %s14
      %p981 = scmp.lt.s32.totalorder %s980, 7
      %s982 = scalar_select %p981, %s980, 7
      %s983 = smul.addr %s982, 16
      %s984 = smul.addr %s983, 8
      %s985 = scalar_lea.vmem %s3, %s984
      // Predicated region
      $region33: #{tpu_custom_call.1} parent=31 // pred_check
        %p986 = pneg %p100
      $region34: #{tpu_custom_call.1} parent=31 // pred_check_branch
        %988 = sbr.rel (%p986) target = $region36
      $region35: #{tpu_custom_call.1} parent=31 // pred_region
        %s989 = smul.u32 2, %s14
      $region36: #{tpu_custom_call.1} parent=31 // pred_fallthru
        _
    $region32: #{tpu_custom_call.1} parent=5 // pred_fallthru
      _
    %p990 = scmp.le.s32.totalorder 2, %s9
    // Predicated region
    $region37: #{tpu_custom_call.1} parent=5 // pred_check
      %p991 = pneg %p990
    $region38: #{tpu_custom_call.1} parent=5 // pred_check_branch
      %993 = sbr.rel (%p991) target = $region40
    $region39: #{tpu_custom_call.1} parent=5 // pred_region
      %s994 = ssub.s32 %s9, 2
      // Predicated region
      $region41: #{tpu_custom_call.1} parent=39 // pred_check
        %p995 = pneg %p106
      $region42: #{tpu_custom_call.1} parent=39 // pred_check_branch
        %997 = sbr.rel (%p995) target = $region44
      $region43: #{tpu_custom_call.1} parent=39 // pred_region
        %s998 = smul.u32 2, %s15
        %p999 = scmp.lt.s32.totalorder %s998, 7
        %s1000 = scalar_select %p999, %s998, 7
        %s1001 = smul.addr %s1000, 16
        %s1002 = smul.addr %s1001, 8
        %s1003 = scalar_lea.vmem %s3, %s1002
      $region44: #{tpu_custom_call.1} parent=39 // pred_fallthru
        _
    $region40: #{tpu_custom_call.1} parent=5 // pred_fallthru
      _
  $region6: #{tpu_custom_call.1} parent=0 // loop_footer
    %s13 = sadd.s32 1, %s9
  $region7: #{tpu_custom_call.1} parent=0 // loop_footer_branch
    %8 = sbr.rel target = $region3
  $region8: #{tpu_custom_call.1} parent=0 // loop_exit
    _

</llo_original>
